<compile_context>
chip_gen: v5e
topology: v5e:2x2
jax: 0.10.0
libtpu: 0.0.40
codegen_flags: <defaults>
</compile_context>

<pallas_src>
import math
import functools

import jax
import jax.numpy as jnp
from jax.experimental import pallas as pl
from jax.experimental.pallas import tpu as pltpu


# ---------------------------------------------------------------------------
# Kernel
# ---------------------------------------------------------------------------
def gat_attention_kernel(h_ref, f1_ref, f2t_ref, adj_ref, o_ref, *,
                         heads, fout, alpha, apply_elu):
    """Attention + aggregation, all heads, one (batch, query-tile) grid point.

    h_ref   : (1, N, H*Fout)       bf16 projected features (all nodes)
    f1_ref  : (1, block_n, H)      f32 per-query scores  <h_i, a1>
    f2t_ref : (1, H, N)            f32 per-neighbor scores <h_j, a2> (pre-transposed)
    adj_ref : (1, block_n, N)      int8 adjacency (0 / 1)
    o_ref   : (1, block_n, H*Fout) output tile (head-concatenated)

    Precondition: every row of adj has at least one edge (e.g. self-loops);
    otherwise the softmax denominator is ~0 and approx reciprocal blows up.
    """
    h_all = h_ref[0]                                   # (N, HF)      bf16
    f1 = f1_ref[0]                                     # (block_n, H) f32
    f2t = f2t_ref[0]                                   # (H, N)       f32

    # Additive adjacency mask, decoded once per tile from the int8 stream and
    # reused across all H heads: 0 where edge, -9e15 otherwise.
    adj = adj_ref[0].astype(jnp.float32)               # (block_n, N)
    bias = jnp.where(adj > 0.5, 0.0, -9e15)

    for hd in range(heads):
        c0 = hd * fout
        # e[i, j] = <h_i, a1> + <h_j, a2>  (scores precomputed outside).
        e = f1[:, hd:hd + 1] + f2t[hd:hd + 1, :]       # (block_n, N)

        # LeakyReLU (maximum form, valid for 0 < alpha < 1) + adjacency mask.
        logits = jnp.maximum(e, alpha * e) + bias

        # Numerically-stable softmax over neighbors j; normalization deferred
        # until after the aggregation matmul (commutes with row-wise dot).
        m = jnp.max(logits, axis=-1, keepdims=True)
        p = jnp.exp(logits - m)                        # (block_n, N) f32
        inv_l = pl.reciprocal(jnp.sum(p, axis=-1, keepdims=True), approx=True)

        # Aggregation on the MXU in bf16 with f32 accumulation, then normalize
        # the narrow (block_n, fout) result instead of the (block_n, N) slab.
        hp = jnp.dot(p.astype(jnp.bfloat16), h_all[:, c0:c0 + fout],
                     preferred_element_type=jnp.float32) * inv_l

        if apply_elu:
            # ELU(1.0); see TODO(synk) about expm1.
            hp = jnp.where(hp > 0.0, hp, jnp.exp(hp) - 1.0)

        # Write this head's columns directly (bounded live ranges across heads).
        o_ref[0, :, c0:c0 + fout] = hp.astype(o_ref.dtype)


# ---------------------------------------------------------------------------
# VMEM budgeting / tiling helpers
# ---------------------------------------------------------------------------
def _pad(v, m):
    return -(-v // m) * m


def _tile_bytes(r, c, itemsize):
    return _pad(r, 8) * _pad(c, 128) * itemsize


def _vmem_cap_bytes():
    """~80% of physical VMEM (headroom for compiler scratch + I/O buffers)."""
    cap = 64 << 20                      # conservative fallback (v7x-sized)
    try:
        info = pltpu.get_tpu_info()
        cap = int(getattr(info, "vmem_capacity_bytes", cap) or cap)
    except Exception:
        pass
    return max(16 << 20, int(cap * 0.8))


def _vmem_estimate(N, block_n, heads, hf, out_itemsize):
    doubled = 2 * (_tile_bytes(N, hf, 2)               # h (bf16, all nodes)
                   + _tile_bytes(block_n, heads, 4)    # f1 tile
                   + _tile_bytes(heads, N, 4)          # f2^T
                   + _tile_bytes(block_n, N, 1)        # adj int8 tile
                   + _tile_bytes(block_n, hf, out_itemsize))
    live = 4 * _tile_bytes(block_n, N, 4) + 2 * _tile_bytes(block_n, hf, 4)
    return doubled + live + (4 << 20)


def _select_block_n(N, heads, hf, out_itemsize, cap):
    if N <= 128 or N % 128 != 0:
        # TODO(synk): masked pl.cdiv tiling for N % 128 != 0 (see header).
        return N
    for cand in (256, 128):             # 256 fills a v6e/v7x 256-wide MXU pass
        if N % cand == 0 and _vmem_estimate(N, cand, heads, hf, out_itemsize) <= cap:
            return cand
    return 128


# ---------------------------------------------------------------------------
# Layer wrapper
# ---------------------------------------------------------------------------
def gat_layer(x, adj_i8, w_all, a2d, *, heads, fout, alpha, apply_elu,
              block_n=None, out_dtype=jnp.float32):
    """All-heads GraphAttentionLayer.

    x      : (B, N, Fin)   node features
    adj_i8 : (B, N, N)     int8 adjacency (0/1)
    w_all  : (Fin, H*Fout) packed per-head weights (head-major columns)
    a2d    : (H, 2*Fout)   attention vectors
    returns (B, N, H*Fout) head-concatenated output
    """
    B, N, fin = x.shape
    hf = heads * fout
    assert w_all.shape == (fin, hf)
    assert a2d.shape == (heads, 2 * fout)
    assert adj_i8.shape == (B, N, N)

    # Projection + attention-vector scores, once per batch (XLA matmuls).
    h_f32 = jnp.einsum("bnf,fk->bnk", x.astype(jnp.bfloat16),
                       w_all.astype(jnp.bfloat16),
                       preferred_element_type=jnp.float32)      # (B, N, HF)
    h4 = h_f32.reshape(B, N, heads, fout)
    f1 = jnp.einsum("bnhf,hf->bnh", h4, a2d[:, :fout])          # (B, N, H)
    f2t = jnp.einsum("bnhf,hf->bhn", h4, a2d[:, fout:])         # (B, H, N)
    h_bf = h_f32.astype(jnp.bfloat16)

    out_itemsize = jnp.dtype(out_dtype).itemsize
    cap = _vmem_cap_bytes()
    if block_n is None:
        block_n = _select_block_n(N, heads, hf, out_itemsize, cap)
    assert N % block_n == 0
    n_i = N // block_n

    kernel = functools.partial(gat_attention_kernel, heads=heads, fout=fout,
                               alpha=alpha, apply_elu=apply_elu)

    vmem_limit = int(min(max(_vmem_estimate(N, block_n, heads, hf, out_itemsize),
                             16 << 20), cap))

    flops = int(2 * B * N * N * hf + 8 * B * heads * N * N)
    transcendentals = int(B * heads * N * N + (B * N * hf if apply_elu else 0))
    bytes_accessed = int(B * n_i * (N * hf * 2 + heads * N * 4)
                         + B * N * heads * 4
                         + B * N * N * 1
                         + B * N * hf * out_itemsize)

    return pl.pallas_call(
        kernel,
        out_shape=jax.ShapeDtypeStruct((B, N, hf), out_dtype),
        grid=(B, n_i),
        in_specs=[
            pl.BlockSpec((1, N, hf), lambda b, i: (b, 0, 0)),           # h (all nodes)
            pl.BlockSpec((1, block_n, heads), lambda b, i: (b, i, 0)),  # f1 tile
            pl.BlockSpec((1, heads, N), lambda b, i: (b, 0, 0)),        # f2^T
            pl.BlockSpec((1, block_n, N), lambda b, i: (b, i, 0)),      # adj int8 tile
        ],
        out_specs=pl.BlockSpec((1, block_n, hf), lambda b, i: (b, i, 0)),
        compiler_params=pltpu.CompilerParams(
            dimension_semantics=("parallel", "parallel"),
            vmem_limit_bytes=vmem_limit),
        cost_estimate=pl.CostEstimate(flops=flops,
                                      transcendentals=transcendentals,
                                      bytes_accessed=bytes_accessed),
    )(h_bf, f1, f2t, adj_i8)


def gat_forward(x, adj, params, *, alpha):
    """GAT.forward (nlayers=2, eval mode: F.dropout == identity)."""
    # TODO(synk): training-mode dropout is not implemented in-kernel.
    inp = x
    B, N, nfeat = x.shape
    H, _, nhid = params["W1"].shape
    nclass = params["W2"].shape[1]

    # int8 adjacency stream (0/1); the -9e15 mask is synthesized in-kernel.
    adj_i8 = (adj > 0).astype(jnp.int8)

    # Layer 1: all heads fused; output is already the dim=2 head concat.
    w1 = jnp.transpose(params["W1"], (1, 0, 2)).reshape(nfeat, H * nhid)
    a1 = params["a1"][:, :, 0]                           # (H, 2*nhid)
    x1 = gat_layer(x, adj_i8, w1, a1, heads=H, fout=nhid, alpha=alpha,
                   apply_elu=True, out_dtype=jnp.bfloat16)   # (B, N, H*nhid)

    # Output layer (concat=False); GAT.forward applies F.elu right after, so
    # the ELU is fused into the kernel.
    w2 = params["W2"]                                    # (H*nhid, nclass)
    a2 = params["a2"][None, :, 0]                        # (1, 2*nclass)
    x2 = gat_layer(x1, adj_i8, w2, a2, heads=1, fout=nclass, alpha=alpha,
                   apply_elu=True, out_dtype=jnp.float32)    # (B, N, nclass)

    return x2 + inp                                      # residual (nclass == nfeat)


# ---------------------------------------------------------------------------
# Reference + test
# ---------------------------------------------------------------------------
def _xavier_uniform(key, shape, gain):
    fan_in, fan_out = shape[-2], shape[-1]
    bound = gain * math.sqrt(6.0 / (fan_in + fan_out))
    return jax.random.uniform(key, shape, jnp.float32, -bound, bound)


def _reference_forward(x, adj, params, alpha):
    """Pure-JAX reference mirroring the PyTorch math with the kernel's
    precision profile (bf16 MXU operands, f32 accumulation, exact softmax
    normalization; approx-reciprocal / exp-1 deltas covered by tolerance)."""
    bias = jnp.where(adj > 0, 0.0, -9e15)

    def layer(xx, W_packed, a2d, heads, fout, apply_elu):
        h = jnp.einsum("bnf,fk->bnk", xx.astype(jnp.bfloat16),
                       W_packed.astype(jnp.bfloat16),
                       preferred_element_type=jnp.float32)
        B, N, _ = h.shape
        h4 = h.reshape(B, N, heads, fout)
        f1 = jnp.einsum("bnhf,hf->bnh", h4, a2d[:, :fout])
        f2 = jnp.einsum("bnhf,hf->bnh", h4, a2d[:, fout:])
        h_bf = h.astype(jnp.bfloat16)
        outs = []
        for hd in range(heads):
            e = f1[:, :, hd][:, :, None] + f2[:, :, hd][:, None, :]  # (B,N,N)
            logits = jnp.maximum(e, alpha * e) + bias
            att = jax.nn.softmax(logits, axis=-1)
            hh = h_bf[:, :, hd * fout:(hd + 1) * fout]
            hp = jnp.einsum("bij,bjf->bif", att.astype(jnp.bfloat16), hh,
                            preferred_element_type=jnp.float32)
            if apply_elu:
                hp = jnp.where(hp > 0, hp, jnp.expm1(hp))
            outs.append(hp)
        return outs[0] if len(outs) == 1 else jnp.concatenate(outs, axis=-1)

    inp = x
    H = params["W1"].shape[0]
    nfeat, nhid = params["W1"].shape[1], params["W1"].shape[2]
    nclass = params["W2"].shape[1]

    w1 = jnp.transpose(params["W1"], (1, 0, 2)).reshape(nfeat, H * nhid)
    a1 = params["a1"][:, :, 0]
    x1 = layer(x, w1, a1, H, nhid, True)
    x1 = x1.astype(jnp.bfloat16).astype(jnp.float32)   # kernel stores layer-1 bf16

    a2 = params["a2"][None, :, 0]
    x2 = layer(x1, params["W2"], a2, 1, nclass, True)  # F.elu in GAT.forward
    return x2 + inp


if __name__ == "__main__":
    # Small shapes consistent with the module. Residual x + input requires
    # nclass == nfeat. Self-loops guarantee every softmax row has an edge.
    B, N = 2, 8
    nfeat = nclass = 16
    nhid = 8
    nheads = 4
    alpha = 0.2
    gain = 1.414

    key = jax.random.PRNGKey(0)
    kx, kadj, kw1, ka1, kw2, ka2 = jax.random.split(key, 6)

    x = jax.random.normal(kx, (B, N, nfeat), jnp.float32)
    adj = (jax.random.uniform(kadj, (B, N, N)) > 0.5).astype(jnp.float32)
    adj = adj + jnp.eye(N, dtype=jnp.float32)[None]

    params = {
        "W1": _xavier_uniform(kw1, (nheads, nfeat, nhid), gain),
        "a1": _xavier_uniform(ka1, (nheads, 2 * nhid, 1), gain),
        "W2": _xavier_uniform(kw2, (nhid * nheads, nclass), gain),
        "a2": _xavier_uniform(ka2, (2 * nclass, 1), gain),
    }

    fwd = jax.jit(functools.partial(gat_forward, alpha=alpha))
    out = jax.block_until_ready(fwd(x, adj, params))
    assert out.shape == (B, N, nclass)

    ref = _reference_forward(x, adj, params, alpha)
    assert jnp.allclose(out, ref, atol=1e-2, rtol=1e-2), (
        "mismatch vs reference, max abs diff = "
        f"{float(jnp.max(jnp.abs(out - ref)))}")

    print("KERNEL_OK")
</pallas_src>

<mosaic_0001>
module attributes {stable_mosaic.version = 11 : i64} {
  func.func @gat_attention_kernel(%arg0: i32, %arg1: i32, %arg2: memref<1x8x32xbf16, #tpu.memory_space<vmem>>, %arg3: memref<1x8x4xf32, #tpu.memory_space<vmem>>, %arg4: memref<1x4x8xf32, #tpu.memory_space<vmem>>, %arg5: memref<1x8x8xi8, #tpu.memory_space<vmem>>, %arg6: memref<1x8x32xbf16, #tpu.memory_space<vmem>>) attributes {dimension_semantics = [#tpu.dimension_semantics<parallel>, #tpu.dimension_semantics<parallel>], iteration_bounds = array<i64: 2, 1>, scalar_prefetch = 0 : i64, scratch_operands = 0 : i64, tpu.core_type = #tpu.core_type<tc>, window_params = [{transform_indices = @transform_0, window_bounds = array<i64: 1, 8, 32>}, {transform_indices = @transform_1, window_bounds = array<i64: 1, 8, 4>}, {transform_indices = @transform_2, window_bounds = array<i64: 1, 4, 8>}, {transform_indices = @transform_3, window_bounds = array<i64: 1, 8, 8>}, {transform_indices = @transform_4, window_bounds = array<i64: 1, 8, 32>}]} {
    %c0 = arith.constant 0 : index
    %c0_0 = arith.constant 0 : index
    %c0_1 = arith.constant 0 : index
    %0 = vector.load %arg2[%c0, %c0_0, %c0_1] : memref<1x8x32xbf16, #tpu.memory_space<vmem>>, vector<1x8x32xbf16>
    %1 = vector.shape_cast %0 : vector<1x8x32xbf16> to vector<8x32xbf16>
    %c0_2 = arith.constant 0 : index
    %c0_3 = arith.constant 0 : index
    %c0_4 = arith.constant 0 : index
    %2 = vector.load %arg3[%c0_2, %c0_3, %c0_4] : memref<1x8x4xf32, #tpu.memory_space<vmem>>, vector<1x8x4xf32>
    %3 = vector.shape_cast %2 : vector<1x8x4xf32> to vector<8x4xf32>
    %c0_5 = arith.constant 0 : index
    %c0_6 = arith.constant 0 : index
    %c0_7 = arith.constant 0 : index
    %4 = vector.load %arg4[%c0_5, %c0_6, %c0_7] : memref<1x4x8xf32, #tpu.memory_space<vmem>>, vector<1x4x8xf32>
    %5 = vector.shape_cast %4 : vector<1x4x8xf32> to vector<4x8xf32>
    %c0_8 = arith.constant 0 : index
    %c0_9 = arith.constant 0 : index
    %c0_10 = arith.constant 0 : index
    %6 = vector.load %arg5[%c0_8, %c0_9, %c0_10] : memref<1x8x8xi8, #tpu.memory_space<vmem>>, vector<1x8x8xi8>
    %7 = vector.shape_cast %6 : vector<1x8x8xi8> to vector<8x8xi8>
    %8 = arith.sitofp %7 : vector<8x8xi8> to vector<8x8xf32>
    %cst = arith.constant 5.000000e-01 : f32
    %9 = vector.broadcast %cst : f32 to vector<8x8xf32>
    %10 = arith.cmpf ogt, %8, %9 : vector<8x8xf32>
    %cst_11 = arith.constant 0.000000e+00 : f32
    %cst_12 = arith.constant -9.000000e+15 : f32
    %11 = vector.broadcast %cst_11 : f32 to vector<8x8xf32>
    %12 = vector.broadcast %cst_12 : f32 to vector<8x8xf32>
    %13 = arith.select %10, %11, %12 : vector<8x8xi1>, vector<8x8xf32>
    %14 = vector.extract_strided_slice %3 {offsets = [0, 0], sizes = [8, 1], strides = [1, 1]} : vector<8x4xf32> to vector<8x1xf32>
    %15 = vector.extract_strided_slice %5 {offsets = [0, 0], sizes = [1, 8], strides = [1, 1]} : vector<4x8xf32> to vector<1x8xf32>
    %16 = vector.broadcast %14 : vector<8x1xf32> to vector<8x8xf32>
    %17 = vector.broadcast %15 : vector<1x8xf32> to vector<8x8xf32>
    %18 = arith.addf %16, %17 : vector<8x8xf32>
    %cst_13 = arith.constant 2.000000e-01 : f32
    %19 = vector.broadcast %cst_13 : f32 to vector<8x8xf32>
    %20 = arith.mulf %19, %18 : vector<8x8xf32>
    %21 = arith.maximumf %18, %20 : vector<8x8xf32>
    %22 = arith.addf %21, %13 : vector<8x8xf32>
    %cst_14 = arith.constant dense<0xFF800000> : vector<8xf32>
    %23 = vector.multi_reduction <maximumf>, %22, %cst_14 [1] : vector<8x8xf32> to vector<8xf32>
    %24 = vector.shape_cast %23 : vector<8xf32> to vector<8x1xf32>
    %25 = vector.broadcast %24 : vector<8x1xf32> to vector<8x8xf32>
    %26 = arith.subf %22, %25 : vector<8x8xf32>
    %27 = math.exp %26 : vector<8x8xf32>
    %cst_15 = arith.constant dense<0.000000e+00> : vector<8xf32>
    %28 = vector.multi_reduction <add>, %27, %cst_15 [1] : vector<8x8xf32> to vector<8xf32>
    %29 = vector.shape_cast %28 : vector<8xf32> to vector<8x1xf32>
    %30 = tpu.reciprocal %29 {approx = true} : vector<8x1xf32> -> vector<8x1xf32>
    %31 = arith.truncf %27 : vector<8x8xf32> to vector<8x8xbf16>
    %32 = vector.extract_strided_slice %1 {offsets = [0, 0], sizes = [8, 8], strides = [1, 1]} : vector<8x32xbf16> to vector<8x8xbf16>
    %cst_16 = arith.constant dense<0.000000e+00> : vector<8x8xf32>
    %33 = tpu.matmul %31, %32, %cst_16 {dimension_numbers = #tpu.dot_dimension_numbers<[1], [0], [0], [1], [0, 0, 1, 1], [], []>} : vector<8x8xbf16>, vector<8x8xbf16>, vector<8x8xf32> -> vector<8x8xf32>
    %34 = vector.broadcast %30 : vector<8x1xf32> to vector<8x8xf32>
    %35 = arith.mulf %33, %34 : vector<8x8xf32>
    %cst_17 = arith.constant 0.000000e+00 : f32
    %36 = vector.broadcast %cst_17 : f32 to vector<8x8xf32>
    %37 = arith.cmpf ogt, %35, %36 : vector<8x8xf32>
    %38 = math.exp %35 : vector<8x8xf32>
    %cst_18 = arith.constant 1.000000e+00 : f32
    %39 = vector.broadcast %cst_18 : f32 to vector<8x8xf32>
    %40 = arith.subf %38, %39 : vector<8x8xf32>
    %41 = arith.select %37, %35, %40 : vector<8x8xi1>, vector<8x8xf32>
    %42 = arith.truncf %41 : vector<8x8xf32> to vector<8x8xbf16>
    %c0_19 = arith.constant 0 : index
    %c0_20 = arith.constant 0 : index
    %c0_21 = arith.constant 0 : index
    %43 = vector.load %arg6[%c0_19, %c0_20, %c0_21] : memref<1x8x32xbf16, #tpu.memory_space<vmem>>, vector<1x8x8xbf16>
    %44 = vector.shape_cast %43 : vector<1x8x8xbf16> to vector<8x8xbf16>
    %45 = vector.shape_cast %42 : vector<8x8xbf16> to vector<1x8x8xbf16>
    tpu.vector_store %arg6[%c0_19, %c0_20, %c0_21], %45 {strides = array<i32>} : memref<1x8x32xbf16, #tpu.memory_space<vmem>>, vector<1x8x8xbf16>,
    %46 = vector.extract_strided_slice %3 {offsets = [0, 1], sizes = [8, 1], strides = [1, 1]} : vector<8x4xf32> to vector<8x1xf32>
    %47 = vector.extract_strided_slice %5 {offsets = [1, 0], sizes = [1, 8], strides = [1, 1]} : vector<4x8xf32> to vector<1x8xf32>
    %48 = vector.broadcast %46 : vector<8x1xf32> to vector<8x8xf32>
    %49 = vector.broadcast %47 : vector<1x8xf32> to vector<8x8xf32>
    %50 = arith.addf %48, %49 : vector<8x8xf32>
    %cst_22 = arith.constant 2.000000e-01 : f32
    %51 = vector.broadcast %cst_22 : f32 to vector<8x8xf32>
    %52 = arith.mulf %51, %50 : vector<8x8xf32>
    %53 = arith.maximumf %50, %52 : vector<8x8xf32>
    %54 = arith.addf %53, %13 : vector<8x8xf32>
    %cst_23 = arith.constant dense<0xFF800000> : vector<8xf32>
    %55 = vector.multi_reduction <maximumf>, %54, %cst_23 [1] : vector<8x8xf32> to vector<8xf32>
    %56 = vector.shape_cast %55 : vector<8xf32> to vector<8x1xf32>
    %57 = vector.broadcast %56 : vector<8x1xf32> to vector<8x8xf32>
    %58 = arith.subf %54, %57 : vector<8x8xf32>
    %59 = math.exp %58 : vector<8x8xf32>
    %cst_24 = arith.constant dense<0.000000e+00> : vector<8xf32>
    %60 = vector.multi_reduction <add>, %59, %cst_24 [1] : vector<8x8xf32> to vector<8xf32>
    %61 = vector.shape_cast %60 : vector<8xf32> to vector<8x1xf32>
    %62 = tpu.reciprocal %61 {approx = true} : vector<8x1xf32> -> vector<8x1xf32>
    %63 = arith.truncf %59 : vector<8x8xf32> to vector<8x8xbf16>
    %64 = vector.extract_strided_slice %1 {offsets = [0, 8], sizes = [8, 8], strides = [1, 1]} : vector<8x32xbf16> to vector<8x8xbf16>
    %cst_25 = arith.constant dense<0.000000e+00> : vector<8x8xf32>
    %65 = tpu.matmul %63, %64, %cst_25 {dimension_numbers = #tpu.dot_dimension_numbers<[1], [0], [0], [1], [0, 0, 1, 1], [], []>} : vector<8x8xbf16>, vector<8x8xbf16>, vector<8x8xf32> -> vector<8x8xf32>
    %66 = vector.broadcast %62 : vector<8x1xf32> to vector<8x8xf32>
    %67 = arith.mulf %65, %66 : vector<8x8xf32>
    %cst_26 = arith.constant 0.000000e+00 : f32
    %68 = vector.broadcast %cst_26 : f32 to vector<8x8xf32>
    %69 = arith.cmpf ogt, %67, %68 : vector<8x8xf32>
    %70 = math.exp %67 : vector<8x8xf32>
    %cst_27 = arith.constant 1.000000e+00 : f32
    %71 = vector.broadcast %cst_27 : f32 to vector<8x8xf32>
    %72 = arith.subf %70, %71 : vector<8x8xf32>
    %73 = arith.select %69, %67, %72 : vector<8x8xi1>, vector<8x8xf32>
    %74 = arith.truncf %73 : vector<8x8xf32> to vector<8x8xbf16>
    %c0_28 = arith.constant 0 : index
    %c0_29 = arith.constant 0 : index
    %c8 = arith.constant 8 : index
    %75 = vector.load %arg6[%c0_28, %c0_29, %c8] : memref<1x8x32xbf16, #tpu.memory_space<vmem>>, vector<1x8x8xbf16>
    %76 = vector.shape_cast %75 : vector<1x8x8xbf16> to vector<8x8xbf16>
    %77 = vector.shape_cast %74 : vector<8x8xbf16> to vector<1x8x8xbf16>
    tpu.vector_store %arg6[%c0_28, %c0_29, %c8], %77 {strides = array<i32>} : memref<1x8x32xbf16, #tpu.memory_space<vmem>>, vector<1x8x8xbf16>,
    %78 = vector.extract_strided_slice %3 {offsets = [0, 2], sizes = [8, 1], strides = [1, 1]} : vector<8x4xf32> to vector<8x1xf32>
    %79 = vector.extract_strided_slice %5 {offsets = [2, 0], sizes = [1, 8], strides = [1, 1]} : vector<4x8xf32> to vector<1x8xf32>
    %80 = vector.broadcast %78 : vector<8x1xf32> to vector<8x8xf32>
    %81 = vector.broadcast %79 : vector<1x8xf32> to vector<8x8xf32>
    %82 = arith.addf %80, %81 : vector<8x8xf32>
    %cst_30 = arith.constant 2.000000e-01 : f32
    %83 = vector.broadcast %cst_30 : f32 to vector<8x8xf32>
    %84 = arith.mulf %83, %82 : vector<8x8xf32>
    %85 = arith.maximumf %82, %84 : vector<8x8xf32>
    %86 = arith.addf %85, %13 : vector<8x8xf32>
    %cst_31 = arith.constant dense<0xFF800000> : vector<8xf32>
    %87 = vector.multi_reduction <maximumf>, %86, %cst_31 [1] : vector<8x8xf32> to vector<8xf32>
    %88 = vector.shape_cast %87 : vector<8xf32> to vector<8x1xf32>
    %89 = vector.broadcast %88 : vector<8x1xf32> to vector<8x8xf32>
    %90 = arith.subf %86, %89 : vector<8x8xf32>
    %91 = math.exp %90 : vector<8x8xf32>
    %cst_32 = arith.constant dense<0.000000e+00> : vector<8xf32>
    %92 = vector.multi_reduction <add>, %91, %cst_32 [1] : vector<8x8xf32> to vector<8xf32>
    %93 = vector.shape_cast %92 : vector<8xf32> to vector<8x1xf32>
    %94 = tpu.reciprocal %93 {approx = true} : vector<8x1xf32> -> vector<8x1xf32>
    %95 = arith.truncf %91 : vector<8x8xf32> to vector<8x8xbf16>
    %96 = vector.extract_strided_slice %1 {offsets = [0, 16], sizes = [8, 8], strides = [1, 1]} : vector<8x32xbf16> to vector<8x8xbf16>
    %cst_33 = arith.constant dense<0.000000e+00> : vector<8x8xf32>
    %97 = tpu.matmul %95, %96, %cst_33 {dimension_numbers = #tpu.dot_dimension_numbers<[1], [0], [0], [1], [0, 0, 1, 1], [], []>} : vector<8x8xbf16>, vector<8x8xbf16>, vector<8x8xf32> -> vector<8x8xf32>
    %98 = vector.broadcast %94 : vector<8x1xf32> to vector<8x8xf32>
    %99 = arith.mulf %97, %98 : vector<8x8xf32>
    %cst_34 = arith.constant 0.000000e+00 : f32
    %100 = vector.broadcast %cst_34 : f32 to vector<8x8xf32>
    %101 = arith.cmpf ogt, %99, %100 : vector<8x8xf32>
    %102 = math.exp %99 : vector<8x8xf32>
    %cst_35 = arith.constant 1.000000e+00 : f32
    %103 = vector.broadcast %cst_35 : f32 to vector<8x8xf32>
    %104 = arith.subf %102, %103 : vector<8x8xf32>
    %105 = arith.select %101, %99, %104 : vector<8x8xi1>, vector<8x8xf32>
    %106 = arith.truncf %105 : vector<8x8xf32> to vector<8x8xbf16>
    %c0_36 = arith.constant 0 : index
    %c0_37 = arith.constant 0 : index
    %c16 = arith.constant 16 : index
    %107 = vector.load %arg6[%c0_36, %c0_37, %c16] : memref<1x8x32xbf16, #tpu.memory_space<vmem>>, vector<1x8x8xbf16>
    %108 = vector.shape_cast %107 : vector<1x8x8xbf16> to vector<8x8xbf16>
    %109 = vector.shape_cast %106 : vector<8x8xbf16> to vector<1x8x8xbf16>
    tpu.vector_store %arg6[%c0_36, %c0_37, %c16], %109 {strides = array<i32>} : memref<1x8x32xbf16, #tpu.memory_space<vmem>>, vector<1x8x8xbf16>,
    %110 = vector.extract_strided_slice %3 {offsets = [0, 3], sizes = [8, 1], strides = [1, 1]} : vector<8x4xf32> to vector<8x1xf32>
    %111 = vector.extract_strided_slice %5 {offsets = [3, 0], sizes = [1, 8], strides = [1, 1]} : vector<4x8xf32> to vector<1x8xf32>
    %112 = vector.broadcast %110 : vector<8x1xf32> to vector<8x8xf32>
    %113 = vector.broadcast %111 : vector<1x8xf32> to vector<8x8xf32>
    %114 = arith.addf %112, %113 : vector<8x8xf32>
    %cst_38 = arith.constant 2.000000e-01 : f32
    %115 = vector.broadcast %cst_38 : f32 to vector<8x8xf32>
    %116 = arith.mulf %115, %114 : vector<8x8xf32>
    %117 = arith.maximumf %114, %116 : vector<8x8xf32>
    %118 = arith.addf %117, %13 : vector<8x8xf32>
    %cst_39 = arith.constant dense<0xFF800000> : vector<8xf32>
    %119 = vector.multi_reduction <maximumf>, %118, %cst_39 [1] : vector<8x8xf32> to vector<8xf32>
    %120 = vector.shape_cast %119 : vector<8xf32> to vector<8x1xf32>
    %121 = vector.broadcast %120 : vector<8x1xf32> to vector<8x8xf32>
    %122 = arith.subf %118, %121 : vector<8x8xf32>
    %123 = math.exp %122 : vector<8x8xf32>
    %cst_40 = arith.constant dense<0.000000e+00> : vector<8xf32>
    %124 = vector.multi_reduction <add>, %123, %cst_40 [1] : vector<8x8xf32> to vector<8xf32>
    %125 = vector.shape_cast %124 : vector<8xf32> to vector<8x1xf32>
    %126 = tpu.reciprocal %125 {approx = true} : vector<8x1xf32> -> vector<8x1xf32>
    %127 = arith.truncf %123 : vector<8x8xf32> to vector<8x8xbf16>
    %128 = vector.extract_strided_slice %1 {offsets = [0, 24], sizes = [8, 8], strides = [1, 1]} : vector<8x32xbf16> to vector<8x8xbf16>
    %cst_41 = arith.constant dense<0.000000e+00> : vector<8x8xf32>
    %129 = tpu.matmul %127, %128, %cst_41 {dimension_numbers = #tpu.dot_dimension_numbers<[1], [0], [0], [1], [0, 0, 1, 1], [], []>} : vector<8x8xbf16>, vector<8x8xbf16>, vector<8x8xf32> -> vector<8x8xf32>
    %130 = vector.broadcast %126 : vector<8x1xf32> to vector<8x8xf32>
    %131 = arith.mulf %129, %130 : vector<8x8xf32>
    %cst_42 = arith.constant 0.000000e+00 : f32
    %132 = vector.broadcast %cst_42 : f32 to vector<8x8xf32>
    %133 = arith.cmpf ogt, %131, %132 : vector<8x8xf32>
    %134 = math.exp %131 : vector<8x8xf32>
    %cst_43 = arith.constant 1.000000e+00 : f32
    %135 = vector.broadcast %cst_43 : f32 to vector<8x8xf32>
    %136 = arith.subf %134, %135 : vector<8x8xf32>
    %137 = arith.select %133, %131, %136 : vector<8x8xi1>, vector<8x8xf32>
    %138 = arith.truncf %137 : vector<8x8xf32> to vector<8x8xbf16>
    %c0_44 = arith.constant 0 : index
    %c0_45 = arith.constant 0 : index
    %c24 = arith.constant 24 : index
    %139 = vector.load %arg6[%c0_44, %c0_45, %c24] : memref<1x8x32xbf16, #tpu.memory_space<vmem>>, vector<1x8x8xbf16>
    %140 = vector.shape_cast %139 : vector<1x8x8xbf16> to vector<8x8xbf16>
    %141 = vector.shape_cast %138 : vector<8x8xbf16> to vector<1x8x8xbf16>
    tpu.vector_store %arg6[%c0_44, %c0_45, %c24], %141 {strides = array<i32>} : memref<1x8x32xbf16, #tpu.memory_space<vmem>>, vector<1x8x8xbf16>,
    return
  }
  func.func @transform_0(%arg0: i32, %arg1: i32) -> (i32, i32, i32) {
    %c0_i32 = arith.constant 0 : i32
    %c0_i32_0 = arith.constant 0 : i32
    %c0_i32_1 = arith.constant 0 : i32
    return %arg0, %c0_i32, %c0_i32_0 : i32, i32, i32
  }
  func.func @transform_1(%arg0: i32, %arg1: i32) -> (i32, i32, i32) {
    %c0_i32 = arith.constant 0 : i32
    %c0_i32_0 = arith.constant 0 : i32
    return %arg0, %arg1, %c0_i32 : i32, i32, i32
  }
  func.func @transform_2(%arg0: i32, %arg1: i32) -> (i32, i32, i32) {
    %c0_i32 = arith.constant 0 : i32
    %c0_i32_0 = arith.constant 0 : i32
    %c0_i32_1 = arith.constant 0 : i32
    return %arg0, %c0_i32, %c0_i32_0 : i32, i32, i32
  }
  func.func @transform_3(%arg0: i32, %arg1: i32) -> (i32, i32, i32) {
    %c0_i32 = arith.constant 0 : i32
    %c0_i32_0 = arith.constant 0 : i32
    return %arg0, %arg1, %c0_i32 : i32, i32, i32
  }
  func.func @transform_4(%arg0: i32, %arg1: i32) -> (i32, i32, i32) {
    %c0_i32 = arith.constant 0 : i32
    %c0_i32_0 = arith.constant 0 : i32
    return %arg0, %arg1, %c0_i32 : i32, i32, i32
  }
}

module attributes {stable_mosaic.version = 11 : i64} {
  func.func @gat_attention_kernel(%arg0: i32, %arg1: i32, %arg2: memref<1x8x16xbf16, #tpu.memory_space<vmem>>, %arg3: memref<1x8x1xf32, #tpu.memory_space<vmem>>, %arg4: memref<1x1x8xf32, #tpu.memory_space<vmem>>, %arg5: memref<1x8x8xi8, #tpu.memory_space<vmem>>, %arg6: memref<1x8x16xf32, #tpu.memory_space<vmem>>) attributes {dimension_semantics = [#tpu.dimension_semantics<parallel>, #tpu.dimension_semantics<parallel>], iteration_bounds = array<i64: 2, 1>, scalar_prefetch = 0 : i64, scratch_operands = 0 : i64, tpu.core_type = #tpu.core_type<tc>, window_params = [{transform_indices = @transform_0, window_bounds = array<i64: 1, 8, 16>}, {transform_indices = @transform_1, window_bounds = array<i64: 1, 8, 1>}, {transform_indices = @transform_2, window_bounds = array<i64: 1, 1, 8>}, {transform_indices = @transform_3, window_bounds = array<i64: 1, 8, 8>}, {transform_indices = @transform_4, window_bounds = array<i64: 1, 8, 16>}]} {
    %c0 = arith.constant 0 : index
    %c0_0 = arith.constant 0 : index
    %c0_1 = arith.constant 0 : index
    %0 = vector.load %arg2[%c0, %c0_0, %c0_1] : memref<1x8x16xbf16, #tpu.memory_space<vmem>>, vector<1x8x16xbf16>
    %1 = vector.shape_cast %0 : vector<1x8x16xbf16> to vector<8x16xbf16>
    %c0_2 = arith.constant 0 : index
    %c0_3 = arith.constant 0 : index
    %c0_4 = arith.constant 0 : index
    %2 = vector.load %arg3[%c0_2, %c0_3, %c0_4] : memref<1x8x1xf32, #tpu.memory_space<vmem>>, vector<1x8x1xf32>
    %3 = vector.shape_cast %2 : vector<1x8x1xf32> to vector<8x1xf32>
    %c0_5 = arith.constant 0 : index
    %c0_6 = arith.constant 0 : index
    %c0_7 = arith.constant 0 : index
    %4 = vector.load %arg4[%c0_5, %c0_6, %c0_7] : memref<1x1x8xf32, #tpu.memory_space<vmem>>, vector<1x1x8xf32>
    %5 = vector.shape_cast %4 : vector<1x1x8xf32> to vector<1x8xf32>
    %c0_8 = arith.constant 0 : index
    %c0_9 = arith.constant 0 : index
    %c0_10 = arith.constant 0 : index
    %6 = vector.load %arg5[%c0_8, %c0_9, %c0_10] : memref<1x8x8xi8, #tpu.memory_space<vmem>>, vector<1x8x8xi8>
    %7 = vector.shape_cast %6 : vector<1x8x8xi8> to vector<8x8xi8>
    %8 = arith.sitofp %7 : vector<8x8xi8> to vector<8x8xf32>
    %cst = arith.constant 5.000000e-01 : f32
    %9 = vector.broadcast %cst : f32 to vector<8x8xf32>
    %10 = arith.cmpf ogt, %8, %9 : vector<8x8xf32>
    %cst_11 = arith.constant 0.000000e+00 : f32
    %cst_12 = arith.constant -9.000000e+15 : f32
    %11 = vector.broadcast %cst_11 : f32 to vector<8x8xf32>
    %12 = vector.broadcast %cst_12 : f32 to vector<8x8xf32>
    %13 = arith.select %10, %11, %12 : vector<8x8xi1>, vector<8x8xf32>
    %14 = vector.broadcast %3 : vector<8x1xf32> to vector<8x8xf32>
    %15 = vector.broadcast %5 : vector<1x8xf32> to vector<8x8xf32>
    %16 = arith.addf %14, %15 : vector<8x8xf32>
    %cst_13 = arith.constant 2.000000e-01 : f32
    %17 = vector.broadcast %cst_13 : f32 to vector<8x8xf32>
    %18 = arith.mulf %17, %16 : vector<8x8xf32>
    %19 = arith.maximumf %16, %18 : vector<8x8xf32>
    %20 = arith.addf %19, %13 : vector<8x8xf32>
    %cst_14 = arith.constant dense<0xFF800000> : vector<8xf32>
    %21 = vector.multi_reduction <maximumf>, %20, %cst_14 [1] : vector<8x8xf32> to vector<8xf32>
    %22 = vector.shape_cast %21 : vector<8xf32> to vector<8x1xf32>
    %23 = vector.broadcast %22 : vector<8x1xf32> to vector<8x8xf32>
    %24 = arith.subf %20, %23 : vector<8x8xf32>
    %25 = math.exp %24 : vector<8x8xf32>
    %cst_15 = arith.constant dense<0.000000e+00> : vector<8xf32>
    %26 = vector.multi_reduction <add>, %25, %cst_15 [1] : vector<8x8xf32> to vector<8xf32>
    %27 = vector.shape_cast %26 : vector<8xf32> to vector<8x1xf32>
    %28 = tpu.reciprocal %27 {approx = true} : vector<8x1xf32> -> vector<8x1xf32>
    %29 = arith.truncf %25 : vector<8x8xf32> to vector<8x8xbf16>
    %cst_16 = arith.constant dense<0.000000e+00> : vector<8x16xf32>
    %30 = tpu.matmul %29, %1, %cst_16 {dimension_numbers = #tpu.dot_dimension_numbers<[1], [0], [0], [1], [0, 0, 1, 1], [], []>} : vector<8x8xbf16>, vector<8x16xbf16>, vector<8x16xf32> -> vector<8x16xf32>
    %31 = vector.broadcast %28 : vector<8x1xf32> to vector<8x16xf32>
    %32 = arith.mulf %30, %31 : vector<8x16xf32>
    %cst_17 = arith.constant 0.000000e+00 : f32
    %33 = vector.broadcast %cst_17 : f32 to vector<8x16xf32>
    %34 = arith.cmpf ogt, %32, %33 : vector<8x16xf32>
    %35 = math.exp %32 : vector<8x16xf32>
    %cst_18 = arith.constant 1.000000e+00 : f32
    %36 = vector.broadcast %cst_18 : f32 to vector<8x16xf32>
    %37 = arith.subf %35, %36 : vector<8x16xf32>
    %38 = arith.select %34, %32, %37 : vector<8x16xi1>, vector<8x16xf32>
    %c0_19 = arith.constant 0 : index
    %c0_20 = arith.constant 0 : index
    %c0_21 = arith.constant 0 : index
    %39 = vector.load %arg6[%c0_19, %c0_20, %c0_21] : memref<1x8x16xf32, #tpu.memory_space<vmem>>, vector<1x8x16xf32>
    %40 = vector.shape_cast %39 : vector<1x8x16xf32> to vector<8x16xf32>
    %41 = vector.shape_cast %38 : vector<8x16xf32> to vector<1x8x16xf32>
    tpu.vector_store %arg6[%c0_19, %c0_20, %c0_21], %41 {strides = array<i32>} : memref<1x8x16xf32, #tpu.memory_space<vmem>>, vector<1x8x16xf32>,
    return
  }
  func.func @transform_0(%arg0: i32, %arg1: i32) -> (i32, i32, i32) {
    %c0_i32 = arith.constant 0 : i32
    %c0_i32_0 = arith.constant 0 : i32
    %c0_i32_1 = arith.constant 0 : i32
    return %arg0, %c0_i32, %c0_i32_0 : i32, i32, i32
  }
  func.func @transform_1(%arg0: i32, %arg1: i32) -> (i32, i32, i32) {
    %c0_i32 = arith.constant 0 : i32
    %c0_i32_0 = arith.constant 0 : i32
    return %arg0, %arg1, %c0_i32 : i32, i32, i32
  }
  func.func @transform_2(%arg0: i32, %arg1: i32) -> (i32, i32, i32) {
    %c0_i32 = arith.constant 0 : i32
    %c0_i32_0 = arith.constant 0 : i32
    %c0_i32_1 = arith.constant 0 : i32
    return %arg0, %c0_i32, %c0_i32_0 : i32, i32, i32
  }
  func.func @transform_3(%arg0: i32, %arg1: i32) -> (i32, i32, i32) {
    %c0_i32 = arith.constant 0 : i32
    %c0_i32_0 = arith.constant 0 : i32
    return %arg0, %arg1, %c0_i32 : i32, i32, i32
  }
  func.func @transform_4(%arg0: i32, %arg1: i32) -> (i32, i32, i32) {
    %c0_i32 = arith.constant 0 : i32
    %c0_i32_0 = arith.constant 0 : i32
    return %arg0, %arg1, %c0_i32 : i32, i32, i32
  }
}

</mosaic_0001>

<llo_original>
// kernel: gat_forward.2
$region0: #{gat_forward.2}
  #allocation0 [shape = 'u32[]', space=smem, size = 0x4, offset = 0x4, fixed_abs, tag = 'smem constant byte address 0x4 - core index']
  #allocation1 [shape = 'u32[72,128]{1,0:T(1,128)}', space=vmem, size = 0x9000, scoped, tag = 'internal scratch']
  %s0 = inlined_call_operand.vmem [shape: bf16[2,8,32], index: 0, kind: input, shape index: {}]
  %s1 = inlined_call_operand.vmem [shape: f32[2,8,4], index: 1, kind: input, shape index: {}]
  %s2 = inlined_call_operand.vmem [shape: f32[2,4,8], index: 2, kind: input, shape index: {}]
  %s3 = inlined_call_operand.vmem [shape: s8[2,8,8], index: 3, kind: input, shape index: {}]
  %s4 = inlined_call_operand.vmem [shape: bf16[2,8,32], index: 4, kind: output, shape index: {}]
  %s5 = sld [smem:[#allocation0]]
  $region49: #{gat_forward.2} parent=0
    _
  %s7 = ssub.s32 1, %s5
  %s8 = scalar_select 0, %s7, %s5
  loop: start=0, step=1, limit=4
  $region2: #{gat_forward.2} parent=0 // loop_pre_header
    _
  $region3: #{gat_forward.2} parent=0 // loop_header
    %s10 = sphi 0, %s14
    %p11 = scmp.ge.s32.totalorder %s10, 4
    %s17 = sphi 0, %s29
    %s18 = sphi 0, %s25
    %s19 = sphi 0, %s17
    %s20 = sphi 0, %s18
    %s21 = sphi 0, %s19
    %s22 = sphi 0, %s20
    %s32 = sphi 0, %s34
    %s35 = sphi 0, %s32
    %s36 = sphi 0, %s35
    %s52 = sphi 0, %s36
    %s60 = sphi 0, %s62
    %s63 = sphi 0, %s60
    %s64 = sphi 0, %s63
    %s80 = sphi 0, %s64
    %s86 = sphi 0, %s88
    %s89 = sphi 0, %s86
    %s90 = sphi 0, %s89
    %s106 = sphi 0, %s90
    %s114 = sphi 0, %s116
    %s117 = sphi 0, %s114
    %s118 = sphi 0, %s117
    %s134 = sphi 0, %s118
    %s142 = sphi 0, %s144
    %s145 = sphi 0, %s142
    %s146 = sphi 0, %s145
    %s162 = sphi 0, %s146
  $region4: #{gat_forward.2} parent=0 // loop_header_branch
    %13 = sbr.rel (%p11) target = $region8
  $region5: #{gat_forward.2} parent=0 // loop_body
    %s15 = ssub.s32 %s10, 1
    %s16 = ssub.s32 %s10, 2
    %s23 = sadd.s32 1, %s18
    %p24 = scmp.ge.s32.totalorder %s23, 1
    %s25 = scalar_select %p24, 0, %s23
    %s26 = sadd.s32 1, %s17
    %s27 = scalar_select %p24, %s26, %s17
    %p28 = scmp.ge.s32.totalorder %s27, 2
    %s29 = scalar_select %p28, 0, %s27
    %s30 = ssub.s32 %s17, %s29
    %p31 = scmp.eq.s32.totalorder %s30, 0
    %s33 = sadd.s32 %s32, 1
    %s34 = scalar_select %p31, %s32, %s33
    %p37 = pneg %p31
    %p38 = scmp.eq.s32.totalorder %s10, 1
    %p39 = por %p37, %p38
    %p40 = scmp.ne.s32.totalorder %s32, %s35
    %p41 = scmp.eq.s32.totalorder %s10, 0
    %p42 = por %p40, %p41
    %p43 = scmp.ne.s32.totalorder %s32, %s35
    %p44 = scmp.eq.s32.totalorder %s15, 1
    %p45 = por %p43, %p44
    %p46 = scmp.ne.s32.totalorder %s35, %s36
    %p47 = scmp.eq.s32.totalorder %s15, 0
    %p48 = por %p46, %p47
    %p49 = scmp.ne.s32.totalorder %s35, %s36
    %p50 = scmp.eq.s32.totalorder %s16, 1
    %p51 = por %p49, %p50
    %p53 = scmp.ne.s32.totalorder %s36, %s52
    %p54 = scmp.eq.s32.totalorder %s16, 0
    %p55 = por %p53, %p54
    %s56 = ssub.s32 %s17, %s29
    %s57 = ssub.s32 %s18, %s25
    %s58 = sor.u32 %s56, %s57
    %p59 = scmp.eq.s32.totalorder %s58, 0
    %s61 = sadd.s32 %s60, 1
    %s62 = scalar_select %p59, %s60, %s61
    %p65 = pneg %p59
    %p66 = scmp.eq.s32.totalorder %s10, 1
    %p67 = por %p65, %p66
    %p68 = scmp.ne.s32.totalorder %s60, %s63
    %p69 = scmp.eq.s32.totalorder %s10, 0
    %p70 = por %p68, %p69
    %p71 = scmp.ne.s32.totalorder %s60, %s63
    %p72 = scmp.eq.s32.totalorder %s15, 1
    %p73 = por %p71, %p72
    %p74 = scmp.ne.s32.totalorder %s63, %s64
    %p75 = scmp.eq.s32.totalorder %s15, 0
    %p76 = por %p74, %p75
    %p77 = scmp.ne.s32.totalorder %s63, %s64
    %p78 = scmp.eq.s32.totalorder %s16, 1
    %p79 = por %p77, %p78
    %p81 = scmp.ne.s32.totalorder %s64, %s80
    %p82 = scmp.eq.s32.totalorder %s16, 0
    %p83 = por %p81, %p82
    %s84 = ssub.s32 %s17, %s29
    %p85 = scmp.eq.s32.totalorder %s84, 0
    %s87 = sadd.s32 %s86, 1
    %s88 = scalar_select %p85, %s86, %s87
    %p91 = pneg %p85
    %p92 = scmp.eq.s32.totalorder %s10, 1
    %p93 = por %p91, %p92
    %p94 = scmp.ne.s32.totalorder %s86, %s89
    %p95 = scmp.eq.s32.totalorder %s10, 0
    %p96 = por %p94, %p95
    %p97 = scmp.ne.s32.totalorder %s86, %s89
    %p98 = scmp.eq.s32.totalorder %s15, 1
    %p99 = por %p97, %p98
    %p100 = scmp.ne.s32.totalorder %s89, %s90
    %p101 = scmp.eq.s32.totalorder %s15, 0
    %p102 = por %p100, %p101
    %p103 = scmp.ne.s32.totalorder %s89, %s90
    %p104 = scmp.eq.s32.totalorder %s16, 1
    %p105 = por %p103, %p104
    %p107 = scmp.ne.s32.totalorder %s90, %s106
    %p108 = scmp.eq.s32.totalorder %s16, 0
    %p109 = por %p107, %p108
    %s110 = ssub.s32 %s17, %s29
    %s111 = ssub.s32 %s18, %s25
    %s112 = sor.u32 %s110, %s111
    %p113 = scmp.eq.s32.totalorder %s112, 0
    %s115 = sadd.s32 %s114, 1
    %s116 = scalar_select %p113, %s114, %s115
    %p119 = pneg %p113
    %p120 = scmp.eq.s32.totalorder %s10, 1
    %p121 = por %p119, %p120
    %p122 = scmp.ne.s32.totalorder %s114, %s117
    %p123 = scmp.eq.s32.totalorder %s10, 0
    %p124 = por %p122, %p123
    %p125 = scmp.ne.s32.totalorder %s114, %s117
    %p126 = scmp.eq.s32.totalorder %s15, 1
    %p127 = por %p125, %p126
    %p128 = scmp.ne.s32.totalorder %s117, %s118
    %p129 = scmp.eq.s32.totalorder %s15, 0
    %p130 = por %p128, %p129
    %p131 = scmp.ne.s32.totalorder %s117, %s118
    %p132 = scmp.eq.s32.totalorder %s16, 1
    %p133 = por %p131, %p132
    %p135 = scmp.ne.s32.totalorder %s118, %s134
    %p136 = scmp.eq.s32.totalorder %s16, 0
    %p137 = por %p135, %p136
    %s138 = ssub.s32 %s17, %s29
    %s139 = ssub.s32 %s18, %s25
    %s140 = sor.u32 %s138, %s139
    %p141 = scmp.eq.s32.totalorder %s140, 0
    %s143 = sadd.s32 %s142, 1
    %s144 = scalar_select %p141, %s142, %s143
    %p147 = pneg %p141
    %p148 = scmp.eq.s32.totalorder %s10, 1
    %p149 = por %p147, %p148
    %p150 = scmp.ne.s32.totalorder %s142, %s145
    %p151 = scmp.eq.s32.totalorder %s10, 0
    %p152 = por %p150, %p151
    %p153 = scmp.ne.s32.totalorder %s142, %s145
    %p154 = scmp.eq.s32.totalorder %s15, 1
    %p155 = por %p153, %p154
    %p156 = scmp.ne.s32.totalorder %s145, %s146
    %p157 = scmp.eq.s32.totalorder %s15, 0
    %p158 = por %p156, %p157
    %p159 = scmp.ne.s32.totalorder %s145, %s146
    %p160 = scmp.eq.s32.totalorder %s16, 1
    %p161 = por %p159, %p160
    %p163 = scmp.ne.s32.totalorder %s146, %s162
    %p164 = scmp.eq.s32.totalorder %s16, 0
    %p165 = por %p163, %p164
    %p166 = scmp.le.s32.totalorder 1, %s10
    %p167 = scmp.lt.s32.totalorder %s10, 3
    %p168 = pnand %p166, %p167
    %p169 = pneg %p168
    // Predicated region
    $region9: #{gat_forward.2} parent=5 // pred_check
      _
    $region10: #{gat_forward.2} parent=5 // pred_check_branch
      %171 = sbr.rel (%p168) target = $region12
    $region11: #{gat_forward.2} parent=5 // pred_region
      %s172 = ssub.s32 %s10, 1
    $region12: #{gat_forward.2} parent=5 // pred_fallthru
      _
    %p173 = scmp.lt.s32.totalorder %s10, 2
    // Predicated region
    $region13: #{gat_forward.2} parent=5 // pred_check
      %p174 = pneg %p173
    $region14: #{gat_forward.2} parent=5 // pred_check_branch
      %176 = sbr.rel (%p174) target = $region16
    $region15: #{gat_forward.2} parent=5 // pred_region
      // Predicated region
      $region17: #{gat_forward.2} parent=15 // pred_check
        %p177 = pneg %p42
      $region18: #{gat_forward.2} parent=15 // pred_check_branch
        %179 = sbr.rel (%p177) target = $region20
      $region19: #{gat_forward.2} parent=15 // pred_region
        %p180 = scmp.lt.s32.totalorder %s17, 1
        %s181 = scalar_select %p180, %s17, 1
        %s182 = smul.addr %s181, 4
        %s183 = scalar_lea.vmem %s0, %s182
      $region20: #{gat_forward.2} parent=15 // pred_fallthru
        _
      // Predicated region
      $region21: #{gat_forward.2} parent=15 // pred_check
        %p184 = pneg %p70
      $region22: #{gat_forward.2} parent=15 // pred_check_branch
        %186 = sbr.rel (%p184) target = $region24
      $region23: #{gat_forward.2} parent=15 // pred_region
        %p187 = scmp.lt.s32.totalorder %s17, 1
        %s188 = scalar_select %p187, %s17, 1
        %p189 = scmp.lt.s32.totalorder %s18, 0
        %s190 = scalar_select %p189, %s18, 0
        %s191 = sadd.s32 %s190, %s188
        %s192 = smul.addr %s191, 8
        %s193 = scalar_lea.vmem %s1, %s192
      $region24: #{gat_forward.2} parent=15 // pred_fallthru
        _
      // Predicated region
      $region25: #{gat_forward.2} parent=15 // pred_check
        %p194 = pneg %p96
      $region26: #{gat_forward.2} parent=15 // pred_check_branch
        %196 = sbr.rel (%p194) target = $region28
      $region27: #{gat_forward.2} parent=15 // pred_region
        %p197 = scmp.lt.s32.totalorder %s17, 1
        %s198 = scalar_select %p197, %s17, 1
        %s199 = smul.addr %s198, 4
        %s200 = scalar_lea.vmem %s2, %s199
      $region28: #{gat_forward.2} parent=15 // pred_fallthru
        _
      // Predicated region
      $region29: #{gat_forward.2} parent=15 // pred_check
        %p201 = pneg %p124
      $region30: #{gat_forward.2} parent=15 // pred_check_branch
        %203 = sbr.rel (%p201) target = $region32
      $region31: #{gat_forward.2} parent=15 // pred_region
        %p204 = scmp.lt.s32.totalorder %s17, 1
        %s205 = scalar_select %p204, %s17, 1
        %p206 = scmp.lt.s32.totalorder %s18, 0
        %s207 = scalar_select %p206, %s18, 0
        %s208 = sadd.s32 %s207, %s205
        %s209 = smul.addr %s208, 2
        %s210 = scalar_lea.vmem %s3, %s209
      $region32: #{gat_forward.2} parent=15 // pred_fallthru
        _
    $region16: #{gat_forward.2} parent=5 // pred_fallthru
      _
    %p211 = scmp.le.s32.totalorder 1, %s10
    %p212 = scmp.lt.s32.totalorder %s10, 3
    %p213 = pnand %p211, %p212
    %p214 = pneg %p213
    // Predicated region
    $region33: #{gat_forward.2} parent=5 // pred_check
      _
    $region34: #{gat_forward.2} parent=5 // pred_check_branch
      %216 = sbr.rel (%p213) target = $region36
    $region35: #{gat_forward.2} parent=5 // pred_region
      %s217 = ssub.s32 %s10, 1
      %p218 = scmp.lt.s32.totalorder %s19, 1
      %s219 = scalar_select %p218, %s19, 1
      %s220 = smul.addr %s219, 4
      %s221 = scalar_lea.vmem %s0, %s220
      %p222 = pneg %p48
      %p223 = pneg %p45
      %p224 = scmp.lt.s32.totalorder %s19, 1
      %s225 = scalar_select %p224, %s19, 1
      %p226 = scmp.lt.s32.totalorder %s20, 0
      %s227 = scalar_select %p226, %s20, 0
      %s228 = sadd.s32 %s227, %s225
      %s229 = smul.addr %s228, 8
      %s230 = scalar_lea.vmem %s1, %s229
      %p231 = pneg %p76
      %p232 = pneg %p73
      %p233 = scmp.lt.s32.totalorder %s19, 1
      %s234 = scalar_select %p233, %s19, 1
      %s235 = smul.addr %s234, 4
      %s236 = scalar_lea.vmem %s2, %s235
      %p237 = pneg %p102
      %p238 = pneg %p99
      %p239 = scmp.lt.s32.totalorder %s19, 1
      %s240 = scalar_select %p239, %s19, 1
      %p241 = scmp.lt.s32.totalorder %s20, 0
      %s242 = scalar_select %p241, %s20, 0
      %s243 = sadd.s32 %s242, %s240
      %s244 = smul.addr %s243, 2
      %s245 = scalar_lea.vmem %s3, %s244
      %p246 = pneg %p130
      %p247 = pneg %p127
      %p248 = pneg %p158
      %p249 = pneg %p155
      %p250 = scmp.lt.s32.totalorder %s19, 1
      %s251 = scalar_select %p250, %s19, 1
      %p252 = scmp.lt.s32.totalorder %s20, 0
      %s253 = scalar_select %p252, %s20, 0
      %s254 = sadd.s32 %s253, %s251
      %s255 = smul.addr %s254, 4
      %s256 = scalar_lea.vmem %s4, %s255
      %p257 = scmp.lt.s32.totalorder %s19, 1
      %s258 = scalar_select %p257, %s19, 1
      %s259 = smul.addr %s258, 4
      %s260 = scalar_lea.vmem %s0, %s259
      %p261 = scmp.lt.s32.totalorder %s19, 1
      %s262 = scalar_select %p261, %s19, 1
      %p263 = scmp.lt.s32.totalorder %s20, 0
      %s264 = scalar_select %p263, %s20, 0
      %s265 = sadd.s32 %s264, %s262
      %s266 = smul.addr %s265, 8
      %s267 = scalar_lea.vmem %s1, %s266
      %p268 = scmp.lt.s32.totalorder %s19, 1
      %s269 = scalar_select %p268, %s19, 1
      %s270 = smul.addr %s269, 4
      %s271 = scalar_lea.vmem %s2, %s270
      %p272 = scmp.lt.s32.totalorder %s19, 1
      %s273 = scalar_select %p272, %s19, 1
      %p274 = scmp.lt.s32.totalorder %s20, 0
      %s275 = scalar_select %p274, %s20, 0
      %s276 = sadd.s32 %s275, %s273
      %s277 = smul.addr %s276, 2
      %s278 = scalar_lea.vmem %s3, %s277
      %p279 = scmp.lt.s32.totalorder %s19, 1
      %s280 = scalar_select %p279, %s19, 1
      %p281 = scmp.lt.s32.totalorder %s20, 0
      %s282 = scalar_select %p281, %s20, 0
      %s283 = sadd.s32 %s282, %s280
      %s284 = smul.addr %s283, 4
      %s285 = scalar_lea.vmem %s4, %s284
      %v287 = vld [vmem:[%s260] sm:$0xf]
      %v288 = vld [vmem:[%s267] sm:$0xff]
      %v289 = vld [vmem:[%s271] sm:$0xf]
      %v290 = vld [vmem:[%s278] sm:$0x3]
      %v291 = vunpack.c.0.s8 %v290
      %v292 = vcvt.s32.f32 %v291
      %vm293 = vcmp.gt.f32.partialorder %v292, 0.5
      %v294 = vsel %vm293, 0.0, -9e+15
      %296 = vset.pattern.permute.xlu0 0
      %297 = vperm.xlu0 %296, %v288
      %v298 = vpop.permute.xlu0 %297
      %v300 = vperm.slane %v289, 0
      %v301 = vadd.f32 %v298, %v300
      %v302 = vmul.f32 %v301, 0.2
      %v303 = vmax.f32 %v301, %v302
      %v304 = vadd.f32 %v303, %v294
      %vm305 = vcmask 64512
      %v306 = vsel %vm305, %v304, -inf
      %307 = vmax.xlane.f32.xlu0 %v306
      %v308 = vpop.xlane.xlu0 %307
      %v309 = vsub.f32 %v304, %v308
      %v310 = vmul.f32 %v309, 1.442695
      %v311 = vpow.pop %v310
      %v312 = vsel %vm305, %v311, 0.0
      %313 = vadd.xlane.f32.xlu0 %v312
      %v314 = vpop.xlane.xlu0 %313
      %v315 = vrcp.pop %v314
      %v316 = vpack.c.bf16 %v311, %v311
      %v318 = vsel %vm305, %v316, 0
      %vm320 = vcmask 1043456
      %v322 = vsel %vm320, %v287, 0
      %324 = vmatpush.bf16.msra.mxu0 0
      %325 = vmatpush.bf16.msra.mxu0 0
      %326 = vmatpush.bf16.msra.mxu0 0
      %327 = vmatpush.bf16.msra.mxu0 0
      %328 = vmatpush.bf16.msra.mxu0 0
      %329 = vmatpush.bf16.msra.mxu0 0
      %330 = vmatpush.bf16.msra.mxu0 0
      %331 = vmatpush.bf16.msra.mxu0 %v322
      %332 = vmatmul.bf16.gmra.mxu0 %v318
      %v333 = vpop.f32.mrf.mxu0
      %v334 = vadd.f32 0.0, %v333
      %v335 = vpop.f32.mrf.mxu0
      %336 = vdwg.mxu0
      %v337 = vmul.f32 %v334, %v315
      %vm338 = vcmp.gt.f32.partialorder %v337, 0.0
      %v339 = vmul.f32 %v337, 1.442695
      %v340 = vpow.pop %v339
      %v341 = vsub.f32 %v340, 1.0
      %v342 = vsel %vm338, %v337, %v341
      %v343 = vpack.c.bf16 %v342, %v342
      %vm344 = vcmask 60416
      %345 = vst.msk [vmem:[%s285] sm:$0xf] %vm344, %v343
      %346 = vset.pattern.permute.xlu0 1
      %347 = vperm.xlu0 %346, %v288
      %v348 = vpop.permute.xlu0 %347
      %v350 = vperm.slane %v289, 1
      %v351 = vadd.f32 %v348, %v350
      %v352 = vmul.f32 %v351, 0.2
      %v353 = vmax.f32 %v351, %v352
      %v354 = vadd.f32 %v353, %v294
      %v355 = vsel %vm305, %v354, -inf
      %356 = vmax.xlane.f32.xlu0 %v355
      %v357 = vpop.xlane.xlu0 %356
      %v358 = vsub.f32 %v354, %v357
      %v359 = vmul.f32 %v358, 1.442695
      %v360 = vpow.pop %v359
      %v361 = vsel %vm305, %v360, 0.0
      %362 = vadd.xlane.f32.xlu0 %v361
      %v363 = vpop.xlane.xlu0 %362
      %v364 = vrcp.pop %v363
      %v365 = vpack.c.bf16 %v360, %v360
      %v367 = vunpack.c.l.b16 %v287
      %v368 = vpack.c.b16 %v367, %v367
      %369 = vrot.lane.b32.xlu0 %v368, 120
      %v370 = vpop.permute.xlu0 %369
      %v372 = vsel %vm305, %v365, 0
      %v375 = vsel %vm320, %v370, 0
      %377 = vmatpush.bf16.msra.mxu0 0
      %378 = vmatpush.bf16.msra.mxu0 0
      %379 = vmatpush.bf16.msra.mxu0 0
      %380 = vmatpush.bf16.msra.mxu0 0
      %381 = vmatpush.bf16.msra.mxu0 0
      %382 = vmatpush.bf16.msra.mxu0 0
      %383 = vmatpush.bf16.msra.mxu0 0
      %384 = vmatpush.bf16.msra.mxu0 %v375
      %385 = vmatmul.bf16.gmra.mxu0 %v372
      %v386 = vpop.f32.mrf.mxu0
      %v387 = vadd.f32 0.0, %v386
      %v388 = vpop.f32.mrf.mxu0
      %389 = vdwg.mxu0
      %v390 = vmul.f32 %v387, %v364
      %vm391 = vcmp.gt.f32.partialorder %v390, 0.0
      %v392 = vmul.f32 %v390, 1.442695
      %v393 = vpow.pop %v392
      %v394 = vsub.f32 %v393, 1.0
      %v395 = vsel %vm391, %v390, %v394
      %v396 = vpack.c.bf16 %v395, %v395
      %398 = vrot.lane.b32.xlu0 %v396, 8
      %v399 = vpop.permute.xlu0 %398
      %vm401 = vcmask 126016
      %402 = vst.msk [vmem:[%s285] sm:$0xf] %vm401, %v399
      %403 = vset.pattern.permute.xlu0 2
      %404 = vperm.xlu0 %403, %v288
      %v405 = vpop.permute.xlu0 %404
      %v407 = vperm.slane %v289, 2
      %v408 = vadd.f32 %v405, %v407
      %v409 = vmul.f32 %v408, 0.2
      %v410 = vmax.f32 %v408, %v409
      %v411 = vadd.f32 %v410, %v294
      %v412 = vsel %vm305, %v411, -inf
      %413 = vmax.xlane.f32.xlu0 %v412
      %v414 = vpop.xlane.xlu0 %413
      %v415 = vsub.f32 %v411, %v414
      %v416 = vmul.f32 %v415, 1.442695
      %v417 = vpow.pop %v416
      %v418 = vsel %vm305, %v417, 0.0
      %419 = vadd.xlane.f32.xlu0 %v418
      %v420 = vpop.xlane.xlu0 %419
      %v421 = vrcp.pop %v420
      %v422 = vpack.c.bf16 %v417, %v417
      %423 = vrot.lane.b32.xlu0 %v368, 112
      %v424 = vpop.permute.xlu0 %423
      %v426 = vsel %vm305, %v422, 0
      %v429 = vsel %vm320, %v424, 0
      %431 = vmatpush.bf16.msra.mxu0 0
      %432 = vmatpush.bf16.msra.mxu0 0
      %433 = vmatpush.bf16.msra.mxu0 0
      %434 = vmatpush.bf16.msra.mxu0 0
      %435 = vmatpush.bf16.msra.mxu0 0
      %436 = vmatpush.bf16.msra.mxu0 0
      %437 = vmatpush.bf16.msra.mxu0 0
      %438 = vmatpush.bf16.msra.mxu0 %v429
      %439 = vmatmul.bf16.gmra.mxu0 %v426
      %v440 = vpop.f32.mrf.mxu0
      %v441 = vadd.f32 0.0, %v440
      %v442 = vpop.f32.mrf.mxu0
      %443 = vdwg.mxu0
      %v444 = vmul.f32 %v441, %v421
      %vm445 = vcmp.gt.f32.partialorder %v444, 0.0
      %v446 = vmul.f32 %v444, 1.442695
      %v447 = vpow.pop %v446
      %v448 = vsub.f32 %v447, 1.0
      %v449 = vsel %vm445, %v444, %v448
      %v450 = vpack.c.bf16 %v449, %v449
      %452 = vrot.lane.b32.xlu0 %v450, 16
      %v453 = vpop.permute.xlu0 %452
      %vm455 = vcmask 191616
      %456 = vst.msk [vmem:[%s285] sm:$0xf] %vm455, %v453
      %457 = vset.pattern.permute.xlu0 3
      %458 = vperm.xlu0 %457, %v288
      %v459 = vpop.permute.xlu0 %458
      %v461 = vperm.slane %v289, 3
      %v462 = vadd.f32 %v459, %v461
      %v463 = vmul.f32 %v462, 0.2
      %v464 = vmax.f32 %v462, %v463
      %v465 = vadd.f32 %v464, %v294
      %v466 = vsel %vm305, %v465, -inf
      %467 = vmax.xlane.f32.xlu0 %v466
      %v468 = vpop.xlane.xlu0 %467
      %v469 = vsub.f32 %v465, %v468
      %v470 = vmul.f32 %v469, 1.442695
      %v471 = vpow.pop %v470
      %v472 = vsel %vm305, %v471, 0.0
      %473 = vadd.xlane.f32.xlu0 %v472
      %v474 = vpop.xlane.xlu0 %473
      %v475 = vrcp.pop %v474
      %v476 = vpack.c.bf16 %v471, %v471
      %477 = vrot.lane.b32.xlu0 %v368, 104
      %v478 = vpop.permute.xlu0 %477
      %v480 = vsel %vm305, %v476, 0
      %v483 = vsel %vm320, %v478, 0
      %485 = vmatpush.bf16.msra.mxu0 0
      %486 = vmatpush.bf16.msra.mxu0 0
      %487 = vmatpush.bf16.msra.mxu0 0
      %488 = vmatpush.bf16.msra.mxu0 0
      %489 = vmatpush.bf16.msra.mxu0 0
      %490 = vmatpush.bf16.msra.mxu0 0
      %491 = vmatpush.bf16.msra.mxu0 0
      %492 = vmatpush.bf16.msra.mxu0 %v483
      %493 = vmatmul.bf16.gmra.mxu0 %v480
      %v494 = vpop.f32.mrf.mxu0
      %v495 = vadd.f32 0.0, %v494
      %v496 = vpop.f32.mrf.mxu0
      %497 = vdwg.mxu0
      %v498 = vmul.f32 %v495, %v475
      %vm499 = vcmp.gt.f32.partialorder %v498, 0.0
      %v500 = vmul.f32 %v498, 1.442695
      %v501 = vpow.pop %v500
      %v502 = vsub.f32 %v501, 1.0
      %v503 = vsel %vm499, %v498, %v502
      %v504 = vpack.c.bf16 %v503, %v503
      %506 = vrot.lane.b32.xlu0 %v504, 24
      %v507 = vpop.permute.xlu0 %506
      %vm509 = vcmask 257216
      %510 = vst.msk [vmem:[%s285] sm:$0xf] %vm509, %v507
      %p511 = scmp.lt.s32.totalorder %s19, 1
      %s512 = scalar_select %p511, %s19, 1
      %p513 = scmp.lt.s32.totalorder %s20, 0
      %s514 = scalar_select %p513, %s20, 0
      %s515 = sadd.s32 %s514, %s512
      %s516 = smul.addr %s515, 4
      %s517 = scalar_lea.vmem %s4, %s516
      // Predicated region
      $region37: #{gat_forward.2} parent=35 // pred_check
        %p518 = pneg %p155
      $region38: #{gat_forward.2} parent=35 // pred_check_branch
        %520 = sbr.rel (%p518) target = $region40
      $region39: #{gat_forward.2} parent=35 // pred_region
        _
      $region40: #{gat_forward.2} parent=35 // pred_fallthru
        _
    $region36: #{gat_forward.2} parent=5 // pred_fallthru
      _
    %p521 = scmp.le.s32.totalorder 2, %s10
    // Predicated region
    $region41: #{gat_forward.2} parent=5 // pred_check
      %p522 = pneg %p521
    $region42: #{gat_forward.2} parent=5 // pred_check_branch
      %524 = sbr.rel (%p522) target = $region44
    $region43: #{gat_forward.2} parent=5 // pred_region
      %s525 = ssub.s32 %s10, 2
      // Predicated region
      $region45: #{gat_forward.2} parent=43 // pred_check
        %p526 = pneg %p161
      $region46: #{gat_forward.2} parent=43 // pred_check_branch
        %528 = sbr.rel (%p526) target = $region48
      $region47: #{gat_forward.2} parent=43 // pred_region
        %p529 = scmp.lt.s32.totalorder %s21, 1
        %s530 = scalar_select %p529, %s21, 1
        %p531 = scmp.lt.s32.totalorder %s22, 0
        %s532 = scalar_select %p531, %s22, 0
        %s533 = sadd.s32 %s532, %s530
        %s534 = smul.addr %s533, 4
        %s535 = scalar_lea.vmem %s4, %s534
      $region48: #{gat_forward.2} parent=43 // pred_fallthru
        _
    $region44: #{gat_forward.2} parent=5 // pred_fallthru
      _
  $region6: #{gat_forward.2} parent=0 // loop_footer
    %s14 = sadd.s32 1, %s10
  $region7: #{gat_forward.2} parent=0 // loop_footer_branch
    %9 = sbr.rel target = $region3
  $region8: #{gat_forward.2} parent=0 // loop_exit
    _

// kernel: gat_forward.3
$region0: #{gat_forward.3}
  #allocation0 [shape = 'u32[]', space=smem, size = 0x4, offset = 0x4, fixed_abs, tag = 'smem constant byte address 0x4 - core index']
  #allocation1 [shape = 'u32[72,128]{1,0:T(1,128)}', space=vmem, size = 0x9000, scoped, tag = 'internal scratch']
  %s0 = inlined_call_operand.vmem [shape: bf16[2,8,16], index: 0, kind: input, shape index: {}]
  %s1 = inlined_call_operand.vmem [shape: f32[2,8,1], index: 1, kind: input, shape index: {}]
  %s2 = inlined_call_operand.vmem [shape: f32[2,1,8], index: 2, kind: input, shape index: {}]
  %s3 = inlined_call_operand.vmem [shape: s8[2,8,8], index: 3, kind: input, shape index: {}]
  %s4 = inlined_call_operand.vmem [shape: f32[2,8,16], index: 4, kind: output, shape index: {}]
  %s5 = sld [smem:[#allocation0]]
  $region49: #{gat_forward.3} parent=0
    _
  %s7 = ssub.s32 1, %s5
  %s8 = scalar_select 0, %s7, %s5
  loop: start=0, step=1, limit=4
  $region2: #{gat_forward.3} parent=0 // loop_pre_header
    _
  $region3: #{gat_forward.3} parent=0 // loop_header
    %s10 = sphi 0, %s14
    %p11 = scmp.ge.s32.totalorder %s10, 4
    %s17 = sphi 0, %s29
    %s18 = sphi 0, %s25
    %s19 = sphi 0, %s17
    %s20 = sphi 0, %s18
    %s21 = sphi 0, %s19
    %s22 = sphi 0, %s20
    %s32 = sphi 0, %s34
    %s35 = sphi 0, %s32
    %s36 = sphi 0, %s35
    %s52 = sphi 0, %s36
    %s60 = sphi 0, %s62
    %s63 = sphi 0, %s60
    %s64 = sphi 0, %s63
    %s80 = sphi 0, %s64
    %s86 = sphi 0, %s88
    %s89 = sphi 0, %s86
    %s90 = sphi 0, %s89
    %s106 = sphi 0, %s90
    %s114 = sphi 0, %s116
    %s117 = sphi 0, %s114
    %s118 = sphi 0, %s117
    %s134 = sphi 0, %s118
    %s142 = sphi 0, %s144
    %s145 = sphi 0, %s142
    %s146 = sphi 0, %s145
    %s162 = sphi 0, %s146
  $region4: #{gat_forward.3} parent=0 // loop_header_branch
    %13 = sbr.rel (%p11) target = $region8
  $region5: #{gat_forward.3} parent=0 // loop_body
    %s15 = ssub.s32 %s10, 1
    %s16 = ssub.s32 %s10, 2
    %s23 = sadd.s32 1, %s18
    %p24 = scmp.ge.s32.totalorder %s23, 1
    %s25 = scalar_select %p24, 0, %s23
    %s26 = sadd.s32 1, %s17
    %s27 = scalar_select %p24, %s26, %s17
    %p28 = scmp.ge.s32.totalorder %s27, 2
    %s29 = scalar_select %p28, 0, %s27
    %s30 = ssub.s32 %s17, %s29
    %p31 = scmp.eq.s32.totalorder %s30, 0
    %s33 = sadd.s32 %s32, 1
    %s34 = scalar_select %p31, %s32, %s33
    %p37 = pneg %p31
    %p38 = scmp.eq.s32.totalorder %s10, 1
    %p39 = por %p37, %p38
    %p40 = scmp.ne.s32.totalorder %s32, %s35
    %p41 = scmp.eq.s32.totalorder %s10, 0
    %p42 = por %p40, %p41
    %p43 = scmp.ne.s32.totalorder %s32, %s35
    %p44 = scmp.eq.s32.totalorder %s15, 1
    %p45 = por %p43, %p44
    %p46 = scmp.ne.s32.totalorder %s35, %s36
    %p47 = scmp.eq.s32.totalorder %s15, 0
    %p48 = por %p46, %p47
    %p49 = scmp.ne.s32.totalorder %s35, %s36
    %p50 = scmp.eq.s32.totalorder %s16, 1
    %p51 = por %p49, %p50
    %p53 = scmp.ne.s32.totalorder %s36, %s52
    %p54 = scmp.eq.s32.totalorder %s16, 0
    %p55 = por %p53, %p54
    %s56 = ssub.s32 %s17, %s29
    %s57 = ssub.s32 %s18, %s25
    %s58 = sor.u32 %s56, %s57
    %p59 = scmp.eq.s32.totalorder %s58, 0
    %s61 = sadd.s32 %s60, 1
    %s62 = scalar_select %p59, %s60, %s61
    %p65 = pneg %p59
    %p66 = scmp.eq.s32.totalorder %s10, 1
    %p67 = por %p65, %p66
    %p68 = scmp.ne.s32.totalorder %s60, %s63
    %p69 = scmp.eq.s32.totalorder %s10, 0
    %p70 = por %p68, %p69
    %p71 = scmp.ne.s32.totalorder %s60, %s63
    %p72 = scmp.eq.s32.totalorder %s15, 1
    %p73 = por %p71, %p72
    %p74 = scmp.ne.s32.totalorder %s63, %s64
    %p75 = scmp.eq.s32.totalorder %s15, 0
    %p76 = por %p74, %p75
    %p77 = scmp.ne.s32.totalorder %s63, %s64
    %p78 = scmp.eq.s32.totalorder %s16, 1
    %p79 = por %p77, %p78
    %p81 = scmp.ne.s32.totalorder %s64, %s80
    %p82 = scmp.eq.s32.totalorder %s16, 0
    %p83 = por %p81, %p82
    %s84 = ssub.s32 %s17, %s29
    %p85 = scmp.eq.s32.totalorder %s84, 0
    %s87 = sadd.s32 %s86, 1
    %s88 = scalar_select %p85, %s86, %s87
    %p91 = pneg %p85
    %p92 = scmp.eq.s32.totalorder %s10, 1
    %p93 = por %p91, %p92
    %p94 = scmp.ne.s32.totalorder %s86, %s89
    %p95 = scmp.eq.s32.totalorder %s10, 0
    %p96 = por %p94, %p95
    %p97 = scmp.ne.s32.totalorder %s86, %s89
    %p98 = scmp.eq.s32.totalorder %s15, 1
    %p99 = por %p97, %p98
    %p100 = scmp.ne.s32.totalorder %s89, %s90
    %p101 = scmp.eq.s32.totalorder %s15, 0
    %p102 = por %p100, %p101
    %p103 = scmp.ne.s32.totalorder %s89, %s90
    %p104 = scmp.eq.s32.totalorder %s16, 1
    %p105 = por %p103, %p104
    %p107 = scmp.ne.s32.totalorder %s90, %s106
    %p108 = scmp.eq.s32.totalorder %s16, 0
    %p109 = por %p107, %p108
    %s110 = ssub.s32 %s17, %s29
    %s111 = ssub.s32 %s18, %s25
    %s112 = sor.u32 %s110, %s111
    %p113 = scmp.eq.s32.totalorder %s112, 0
    %s115 = sadd.s32 %s114, 1
    %s116 = scalar_select %p113, %s114, %s115
    %p119 = pneg %p113
    %p120 = scmp.eq.s32.totalorder %s10, 1
    %p121 = por %p119, %p120
    %p122 = scmp.ne.s32.totalorder %s114, %s117
    %p123 = scmp.eq.s32.totalorder %s10, 0
    %p124 = por %p122, %p123
    %p125 = scmp.ne.s32.totalorder %s114, %s117
    %p126 = scmp.eq.s32.totalorder %s15, 1
    %p127 = por %p125, %p126
    %p128 = scmp.ne.s32.totalorder %s117, %s118
    %p129 = scmp.eq.s32.totalorder %s15, 0
    %p130 = por %p128, %p129
    %p131 = scmp.ne.s32.totalorder %s117, %s118
    %p132 = scmp.eq.s32.totalorder %s16, 1
    %p133 = por %p131, %p132
    %p135 = scmp.ne.s32.totalorder %s118, %s134
    %p136 = scmp.eq.s32.totalorder %s16, 0
    %p137 = por %p135, %p136
    %s138 = ssub.s32 %s17, %s29
    %s139 = ssub.s32 %s18, %s25
    %s140 = sor.u32 %s138, %s139
    %p141 = scmp.eq.s32.totalorder %s140, 0
    %s143 = sadd.s32 %s142, 1
    %s144 = scalar_select %p141, %s142, %s143
    %p147 = pneg %p141
    %p148 = scmp.eq.s32.totalorder %s10, 1
    %p149 = por %p147, %p148
    %p150 = scmp.ne.s32.totalorder %s142, %s145
    %p151 = scmp.eq.s32.totalorder %s10, 0
    %p152 = por %p150, %p151
    %p153 = scmp.ne.s32.totalorder %s142, %s145
    %p154 = scmp.eq.s32.totalorder %s15, 1
    %p155 = por %p153, %p154
    %p156 = scmp.ne.s32.totalorder %s145, %s146
    %p157 = scmp.eq.s32.totalorder %s15, 0
    %p158 = por %p156, %p157
    %p159 = scmp.ne.s32.totalorder %s145, %s146
    %p160 = scmp.eq.s32.totalorder %s16, 1
    %p161 = por %p159, %p160
    %p163 = scmp.ne.s32.totalorder %s146, %s162
    %p164 = scmp.eq.s32.totalorder %s16, 0
    %p165 = por %p163, %p164
    %p166 = scmp.le.s32.totalorder 1, %s10
    %p167 = scmp.lt.s32.totalorder %s10, 3
    %p168 = pnand %p166, %p167
    %p169 = pneg %p168
    // Predicated region
    $region9: #{gat_forward.3} parent=5 // pred_check
      _
    $region10: #{gat_forward.3} parent=5 // pred_check_branch
      %171 = sbr.rel (%p168) target = $region12
    $region11: #{gat_forward.3} parent=5 // pred_region
      %s172 = ssub.s32 %s10, 1
    $region12: #{gat_forward.3} parent=5 // pred_fallthru
      _
    %p173 = scmp.lt.s32.totalorder %s10, 2
    // Predicated region
    $region13: #{gat_forward.3} parent=5 // pred_check
      %p174 = pneg %p173
    $region14: #{gat_forward.3} parent=5 // pred_check_branch
      %176 = sbr.rel (%p174) target = $region16
    $region15: #{gat_forward.3} parent=5 // pred_region
      // Predicated region
      $region17: #{gat_forward.3} parent=15 // pred_check
        %p177 = pneg %p42
      $region18: #{gat_forward.3} parent=15 // pred_check_branch
        %179 = sbr.rel (%p177) target = $region20
      $region19: #{gat_forward.3} parent=15 // pred_region
        %p180 = scmp.lt.s32.totalorder %s17, 1
        %s181 = scalar_select %p180, %s17, 1
        %s182 = smul.addr %s181, 4
        %s183 = scalar_lea.vmem %s0, %s182
      $region20: #{gat_forward.3} parent=15 // pred_fallthru
        _
      // Predicated region
      $region21: #{gat_forward.3} parent=15 // pred_check
        %p184 = pneg %p70
      $region22: #{gat_forward.3} parent=15 // pred_check_branch
        %186 = sbr.rel (%p184) target = $region24
      $region23: #{gat_forward.3} parent=15 // pred_region
        %p187 = scmp.lt.s32.totalorder %s17, 1
        %s188 = scalar_select %p187, %s17, 1
        %p189 = scmp.lt.s32.totalorder %s18, 0
        %s190 = scalar_select %p189, %s18, 0
        %s191 = sadd.s32 %s190, %s188
        %s192 = smul.addr %s191, 8
        %s193 = scalar_lea.vmem %s1, %s192
      $region24: #{gat_forward.3} parent=15 // pred_fallthru
        _
      // Predicated region
      $region25: #{gat_forward.3} parent=15 // pred_check
        %p194 = pneg %p96
      $region26: #{gat_forward.3} parent=15 // pred_check_branch
        %196 = sbr.rel (%p194) target = $region28
      $region27: #{gat_forward.3} parent=15 // pred_region
        %p197 = scmp.lt.s32.totalorder %s17, 1
        %s198 = scalar_select %p197, %s17, 1
        %s199 = scalar_lea.vmem %s2, %s198
      $region28: #{gat_forward.3} parent=15 // pred_fallthru
        _
      // Predicated region
      $region29: #{gat_forward.3} parent=15 // pred_check
        %p200 = pneg %p124
      $region30: #{gat_forward.3} parent=15 // pred_check_branch
        %202 = sbr.rel (%p200) target = $region32
      $region31: #{gat_forward.3} parent=15 // pred_region
        %p203 = scmp.lt.s32.totalorder %s17, 1
        %s204 = scalar_select %p203, %s17, 1
        %p205 = scmp.lt.s32.totalorder %s18, 0
        %s206 = scalar_select %p205, %s18, 0
        %s207 = sadd.s32 %s206, %s204
        %s208 = smul.addr %s207, 2
        %s209 = scalar_lea.vmem %s3, %s208
      $region32: #{gat_forward.3} parent=15 // pred_fallthru
        _
    $region16: #{gat_forward.3} parent=5 // pred_fallthru
      _
    %p210 = scmp.le.s32.totalorder 1, %s10
    %p211 = scmp.lt.s32.totalorder %s10, 3
    %p212 = pnand %p210, %p211
    %p213 = pneg %p212
    // Predicated region
    $region33: #{gat_forward.3} parent=5 // pred_check
      _
    $region34: #{gat_forward.3} parent=5 // pred_check_branch
      %215 = sbr.rel (%p212) target = $region36
    $region35: #{gat_forward.3} parent=5 // pred_region
      %s216 = ssub.s32 %s10, 1
      %p217 = scmp.lt.s32.totalorder %s19, 1
      %s218 = scalar_select %p217, %s19, 1
      %s219 = smul.addr %s218, 4
      %s220 = scalar_lea.vmem %s0, %s219
      %p221 = pneg %p48
      %p222 = pneg %p45
      %p223 = scmp.lt.s32.totalorder %s19, 1
      %s224 = scalar_select %p223, %s19, 1
      %p225 = scmp.lt.s32.totalorder %s20, 0
      %s226 = scalar_select %p225, %s20, 0
      %s227 = sadd.s32 %s226, %s224
      %s228 = smul.addr %s227, 8
      %s229 = scalar_lea.vmem %s1, %s228
      %p230 = pneg %p76
      %p231 = pneg %p73
      %p232 = scmp.lt.s32.totalorder %s19, 1
      %s233 = scalar_select %p232, %s19, 1
      %s234 = scalar_lea.vmem %s2, %s233
      %p235 = pneg %p102
      %p236 = pneg %p99
      %p237 = scmp.lt.s32.totalorder %s19, 1
      %s238 = scalar_select %p237, %s19, 1
      %p239 = scmp.lt.s32.totalorder %s20, 0
      %s240 = scalar_select %p239, %s20, 0
      %s241 = sadd.s32 %s240, %s238
      %s242 = smul.addr %s241, 2
      %s243 = scalar_lea.vmem %s3, %s242
      %p244 = pneg %p130
      %p245 = pneg %p127
      %p246 = pneg %p158
      %p247 = pneg %p155
      %p248 = scmp.lt.s32.totalorder %s19, 1
      %s249 = scalar_select %p248, %s19, 1
      %p250 = scmp.lt.s32.totalorder %s20, 0
      %s251 = scalar_select %p250, %s20, 0
      %s252 = sadd.s32 %s251, %s249
      %s253 = smul.addr %s252, 8
      %s254 = scalar_lea.vmem %s4, %s253
      %p255 = scmp.lt.s32.totalorder %s19, 1
      %s256 = scalar_select %p255, %s19, 1
      %s257 = smul.addr %s256, 4
      %s258 = scalar_lea.vmem %s0, %s257
      %p259 = scmp.lt.s32.totalorder %s19, 1
      %s260 = scalar_select %p259, %s19, 1
      %p261 = scmp.lt.s32.totalorder %s20, 0
      %s262 = scalar_select %p261, %s20, 0
      %s263 = sadd.s32 %s262, %s260
      %s264 = smul.addr %s263, 8
      %s265 = scalar_lea.vmem %s1, %s264
      %p266 = scmp.lt.s32.totalorder %s19, 1
      %s267 = scalar_select %p266, %s19, 1
      %s268 = scalar_lea.vmem %s2, %s267
      %p269 = scmp.lt.s32.totalorder %s19, 1
      %s270 = scalar_select %p269, %s19, 1
      %p271 = scmp.lt.s32.totalorder %s20, 0
      %s272 = scalar_select %p271, %s20, 0
      %s273 = sadd.s32 %s272, %s270
      %s274 = smul.addr %s273, 2
      %s275 = scalar_lea.vmem %s3, %s274
      %p276 = scmp.lt.s32.totalorder %s19, 1
      %s277 = scalar_select %p276, %s19, 1
      %p278 = scmp.lt.s32.totalorder %s20, 0
      %s279 = scalar_select %p278, %s20, 0
      %s280 = sadd.s32 %s279, %s277
      %s281 = smul.addr %s280, 8
      %s282 = scalar_lea.vmem %s4, %s281
      %v284 = vld [vmem:[%s258] sm:$0xf]
      %v285 = vld [vmem:[%s265] sm:$0xff]
      %v286 = vld [vmem:[%s268] sm:$0x1]
      %v287 = vld [vmem:[%s275] sm:$0x3]
      %v288 = vunpack.c.0.s8 %v287
      %v289 = vcvt.s32.f32 %v288
      %vm290 = vcmp.gt.f32.partialorder %v289, 0.5
      %v291 = vsel %vm290, 0.0, -9e+15
      %293 = vset.pattern.permute.xlu0 0
      %294 = vperm.xlu0 %293, %v285
      %v295 = vpop.permute.xlu0 %294
      %v298 = vperm.slane %v286, 0
      %v300 = vadd.f32 %v295, %v298
      %v301 = vmul.f32 %v300, 0.2
      %v302 = vmax.f32 %v300, %v301
      %v303 = vadd.f32 %v302, %v291
      %vm304 = vcmask 64512
      %v305 = vsel %vm304, %v303, -inf
      %306 = vmax.xlane.f32.xlu0 %v305
      %v307 = vpop.xlane.xlu0 %306
      %v308 = vsub.f32 %v303, %v307
      %v309 = vmul.f32 %v308, 1.442695
      %v310 = vpow.pop %v309
      %v311 = vsel %vm304, %v310, 0.0
      %312 = vadd.xlane.f32.xlu0 %v311
      %v313 = vpop.xlane.xlu0 %312
      %v314 = vrcp.pop %v313
      %v315 = vpack.c.bf16 %v310, %v310
      %v317 = vsel %vm304, %v315, 0
      %vm319 = vcmask 1043456
      %v321 = vsel %vm319, %v284, 0
      %323 = vmatpush.bf16.msra.mxu0 0
      %324 = vmatpush.bf16.msra.mxu0 0
      %325 = vmatpush.bf16.msra.mxu0 0
      %326 = vmatpush.bf16.msra.mxu0 0
      %327 = vmatpush.bf16.msra.mxu0 0
      %328 = vmatpush.bf16.msra.mxu0 0
      %329 = vmatpush.bf16.msra.mxu0 0
      %330 = vmatpush.bf16.msra.mxu0 %v321
      %331 = vmatmul.bf16.gmra.mxu0 %v317
      %v332 = vpop.f32.mrf.mxu0
      %v333 = vadd.f32 0.0, %v332
      %v334 = vpop.f32.mrf.mxu0
      %335 = vdwg.mxu0
      %v336 = vmul.f32 %v333, %v314
      %vm337 = vcmp.gt.f32.partialorder %v336, 0.0
      %v338 = vmul.f32 %v336, 1.442695
      %v339 = vpow.pop %v338
      %v340 = vsub.f32 %v339, 1.0
      %v341 = vsel %vm337, %v336, %v340
      %vm342 = vcmask 130048
      %343 = vst.msk [vmem:[%s282] sm:$0xff] %vm342, %v341
      %p344 = scmp.lt.s32.totalorder %s19, 1
      %s345 = scalar_select %p344, %s19, 1
      %p346 = scmp.lt.s32.totalorder %s20, 0
      %s347 = scalar_select %p346, %s20, 0
      %s348 = sadd.s32 %s347, %s345
      %s349 = smul.addr %s348, 8
      %s350 = scalar_lea.vmem %s4, %s349
      // Predicated region
      $region37: #{gat_forward.3} parent=35 // pred_check
        %p351 = pneg %p155
      $region38: #{gat_forward.3} parent=35 // pred_check_branch
        %353 = sbr.rel (%p351) target = $region40
      $region39: #{gat_forward.3} parent=35 // pred_region
        _
      $region40: #{gat_forward.3} parent=35 // pred_fallthru
        _
    $region36: #{gat_forward.3} parent=5 // pred_fallthru
      _
    %p354 = scmp.le.s32.totalorder 2, %s10
    // Predicated region
    $region41: #{gat_forward.3} parent=5 // pred_check
      %p355 = pneg %p354
    $region42: #{gat_forward.3} parent=5 // pred_check_branch
      %357 = sbr.rel (%p355) target = $region44
    $region43: #{gat_forward.3} parent=5 // pred_region
      %s358 = ssub.s32 %s10, 2
      // Predicated region
      $region45: #{gat_forward.3} parent=43 // pred_check
        %p359 = pneg %p161
      $region46: #{gat_forward.3} parent=43 // pred_check_branch
        %361 = sbr.rel (%p359) target = $region48
      $region47: #{gat_forward.3} parent=43 // pred_region
        %p362 = scmp.lt.s32.totalorder %s21, 1
        %s363 = scalar_select %p362, %s21, 1
        %p364 = scmp.lt.s32.totalorder %s22, 0
        %s365 = scalar_select %p364, %s22, 0
        %s366 = sadd.s32 %s365, %s363
        %s367 = smul.addr %s366, 8
        %s368 = scalar_lea.vmem %s4, %s367
      $region48: #{gat_forward.3} parent=43 // pred_fallthru
        _
    $region44: #{gat_forward.3} parent=5 // pred_fallthru
      _
  $region6: #{gat_forward.3} parent=0 // loop_footer
    %s14 = sadd.s32 1, %s10
  $region7: #{gat_forward.3} parent=0 // loop_footer_branch
    %9 = sbr.rel target = $region3
  $region8: #{gat_forward.3} parent=0 // loop_exit
    _

</llo_original>
